<compile_context>
chip_gen: v5e
topology: v5e:2x2
jax: 0.10.0
libtpu: 0.0.40
codegen_flags: <defaults>
</compile_context>

<pallas_src>
import functools
import math

import jax
import jax.numpy as jnp
from jax import lax
from jax.experimental import pallas as pl
from jax.experimental.pallas import tpu as pltpu

MIN_NORM = 1e-15            # geoopt min_norm clamp
BALL_EPS_F32 = 4e-3         # geoopt PoincareBall projx eps (float32)
ETA = 1e-5                  # pvae Constants.eta
SOFTPLUS_POS_T = 20.0       # torch softplus threshold (linear regime)
SOFTPLUS_NEG_T = -10.0      # below this, softplus(s) == exp(s) to f32 accuracy
CURVATURE_C = 1.0

# Contract the LAST dim of both operands: A(m,k) x B(n,k) -> (m,n)  (A @ B^T).
_NT = (((1,), (1,)), ((), ()))


def _round_up(n, m):
    return ((n + m - 1) // m) * m


def enc_wrapped_alt_kernel(x_ref, w1_ref, b1_ref, wh_ref, bh_ref,
                           whead_ref, bhead_ref, out_ref,
                           *, num_extra, dc_pad, c):
    f32 = jnp.float32
    bf16 = jnp.bfloat16
    sqrt_c = float(c) ** 0.5

    # --- MLP trunk: Linear(D_in, H) + ReLU, then (L-1) x [Linear(H, H) + ReLU] ---
    x = x_ref[...].astype(bf16)
    h = lax.dot_general(x, w1_ref[...], _NT, preferred_element_type=f32)
    h = jnp.maximum(h + b1_ref[...], 0.0)
    for layer in range(num_extra):
        h = lax.dot_general(h.astype(bf16), wh_ref[layer], _NT,
                            preferred_element_type=f32)
        h = jnp.maximum(h + bh_ref[layer], 0.0)

    # --- fused fc21/fc22 head, produced directly as (dh_pad, TB): one MXU
    # dispatch, lane-dense output, reduction axis = sublanes for the manifold
    # math.  Rows [coord_dim, dc_pad) and beyond the var rows are exact zeros
    # (zero-padded weights/biases) and are sliced off in the wrapper.
    head = lax.dot_general(whead_ref[...], h.astype(bf16), _NT,
                           preferred_element_type=f32) + bhead_ref[...]
    mu_e = head[:dc_pad]          # (dc_pad, TB), padded rows contribute 0
    s = head[dc_pad:]             # (dh_pad - dc_pad, TB)

    # --- manifold.direct_map(mu): Poincare-ball expmap0 (c=1) followed by projx.
    # TODO(synk): direct_map is implemented as PoincareBall.expmap0 + projx; swap
    # this block if pvae defines a different custom map for the Alt encoder.
    sumsq = jnp.maximum(jnp.sum(mu_e * mu_e, axis=0, keepdims=True),
                        MIN_NORM * MIN_NORM)
    u_norm = jnp.sqrt(sumsq)
    inv_norm = lax.rsqrt(sumsq)                     # EUP, avoids f32 divide
    gamma = jnp.tanh(sqrt_c * u_norm) * mu_e * (inv_norm * (1.0 / sqrt_c))
    # projx: clip back strictly inside the ball
    g_sumsq = jnp.maximum(jnp.sum(gamma * gamma, axis=0, keepdims=True),
                          MIN_NORM * MIN_NORM)
    maxnorm = (1.0 - BALL_EPS_F32) / sqrt_c
    gscale = jnp.where(jnp.sqrt(g_sumsq) > maxnorm,
                       maxnorm * lax.rsqrt(g_sumsq), 1.0)
    mu_out = gamma * gscale

    # --- softplus(.) + eta: piecewise (linear / exact log / exp tail) ----------
    exp_s = jnp.exp(jnp.minimum(s, SOFTPLUS_POS_T))
    sp = jnp.where(s > SOFTPLUS_POS_T, s,
                   jnp.where(s < SOFTPLUS_NEG_T, exp_s, jnp.log(1.0 + exp_s)))
    std_out = sp + ETA

    out_ref[...] = jnp.concatenate([mu_out, std_out], axis=0).astype(out_ref.dtype)


def init_params(key, data_size, hidden_dim, num_hidden_layers, coord_dim,
                prior_iso=False):
    """Deterministic synthetic params (PyTorch nn.Linear-style uniform init)."""
    d_in = math.prod(data_size)
    num_extra = num_hidden_layers - 1
    var_dim = 1 if prior_iso else coord_dim
    ks = jax.random.split(key, 8)

    def lin(kw, kb, fan_in, out_dim, stack=None):
        bound = 1.0 / float(fan_in) ** 0.5
        wshape = (out_dim, fan_in) if stack is None else (stack, out_dim, fan_in)
        bshape = (out_dim,) if stack is None else (stack, out_dim)
        return (jax.random.uniform(kw, wshape, jnp.float32, -bound, bound),
                jax.random.uniform(kb, bshape, jnp.float32, -bound, bound))

    w1, b1 = lin(ks[0], ks[1], d_in, hidden_dim)
    wh, bh = lin(ks[2], ks[3], hidden_dim, hidden_dim, stack=max(num_extra, 1))
    if num_extra == 0:                       # dummy, never read by the kernel
        wh, bh = jnp.zeros_like(wh), jnp.zeros_like(bh)
    w21, b21 = lin(ks[4], ks[5], hidden_dim, coord_dim)
    w22, b22 = lin(ks[6], ks[7], hidden_dim, var_dim)
    return dict(w1=w1, b1=b1, wh=wh, bh=bh, w21=w21, b21=b21, w22=w22, b22=b22)


def prepare_params(params):
    """One-time cast/pack of weights into kernel-ready dtypes & layouts.

    Called once at load time so no per-forward XLA cast/reshape passes touch the
    weights in HBM.  fc21/fc22 are fused into a single zero-padded head matrix.
    """
    bf16, f32 = jnp.bfloat16, jnp.float32
    w21, b21 = params["w21"], params["b21"]
    w22, b22 = params["w22"], params["b22"]
    coord_dim, hidden_dim = w21.shape
    var_dim = w22.shape[0]
    dc_pad = _round_up(coord_dim, 8)                  # 8-aligned mu block
    dh_pad = _round_up(dc_pad + var_dim, 8)           # full-sublane output

    whead = jnp.zeros((dh_pad, hidden_dim), f32)
    whead = whead.at[:coord_dim].set(w21).at[dc_pad:dc_pad + var_dim].set(w22)
    bhead = jnp.zeros((dh_pad,), f32)
    bhead = bhead.at[:coord_dim].set(b21).at[dc_pad:dc_pad + var_dim].set(b22)

    return dict(
        w1=params["w1"].astype(bf16),             # (H, D_in)    PyTorch layout
        b1=params["b1"][None, :].astype(f32),     # (1, H)
        wh=params["wh"].astype(bf16),             # (L-1, H, H)
        bh=params["bh"][:, None, :].astype(f32),  # (L-1, 1, H)
        whead=whead.astype(bf16),                 # (dh_pad, H)  fused fc21|fc22
        bhead=bhead[:, None].astype(f32),         # (dh_pad, 1)  column-broadcast
        coord_dim=coord_dim, var_dim=var_dim, dc_pad=dc_pad,
    )


def _vmem_capacity_bytes():
    try:
        return int(pltpu.get_tpu_info().vmem_capacity_bytes)
    except Exception:
        return 64 * 2 ** 20       # v7x-safe fallback


def enc_wrapped_alt_forward(x, prep, *, data_size, num_hidden_layers,
                            c=CURVATURE_C, batch_tile=None):
    d_in = math.prod(data_size)
    num_extra = num_hidden_layers - 1
    lead = x.shape[:x.ndim - len(data_size)]
    batch = math.prod(lead) if lead else 1
    # No jnp.pad and no wrapper-side dtype cast of x: the only HBM traffic on x
    # is the kernel's own tiled read; a ragged last tile is handled by Pallas
    # edge masking (pad columns compute isolated junk and are sliced off below).
    x_flat = x.reshape(batch, d_in)

    w1, b1 = prep["w1"], prep["b1"]
    wh, bh = prep["wh"], prep["bh"]
    whead, bhead = prep["whead"], prep["bhead"]
    coord_dim, var_dim, dc_pad = prep["coord_dim"], prep["var_dim"], prep["dc_pad"]
    hidden_dim = w1.shape[0]
    dh_pad = whead.shape[0]

    weight_bytes = sum(int(a.size) * a.dtype.itemsize
                       for a in (w1, b1, wh, bh, whead, bhead))
    x_bytes = x_flat.dtype.itemsize
    vmem_cap = _vmem_capacity_bytes()

    # Per-row VMEM cost: double-buffered x tile + double-buffered output tile +
    # trunk/head working set (generous).  Weights are VMEM-resident (x2 for the
    # default double-buffer of constant-index blocks).
    per_row = (2 * d_in * x_bytes          # x double buffer
               + 2 * dh_pad * 4            # output double buffer (f32)
               + d_in * 2                  # bf16 copy of x inside the kernel
               + 4 * hidden_dim * 4        # f32/bf16 trunk activations
               + 2 * dh_pad * 4)           # head + branch temporaries
    budget = int(0.6 * vmem_cap) - 2 * weight_bytes
    tb_cap = max(128, min(1024, (budget // per_row) // 128 * 128))
    if batch_tile is not None:
        tb_cap = int(batch_tile)

    if batch <= 256:
        tb = batch                         # single exact tile (no padding at all)
    else:
        # >=2 grid steps so dimension_semantics=("parallel",) can split the
        # batch across both v7x TensorCores; lane dim stays a multiple of 128.
        tb = min(tb_cap, _round_up((batch + 1) // 2, 128))
    n_tiles = (batch + tb - 1) // tb
    b_out = n_tiles * tb

    need = 2 * weight_bytes + per_row * tb + (6 << 20)
    vmem_limit = int(min(int(0.85 * vmem_cap), max(need, 32 << 20)))

    def resident(shape):                   # weights/biases stay in VMEM
        nd = len(shape)
        return pl.BlockSpec(shape, lambda i, _n=nd: (0,) * _n)

    in_specs = [
        pl.BlockSpec((tb, d_in), lambda i: (i, 0)),   # x tiled over batch
        resident(w1.shape), resident(b1.shape),
        resident(wh.shape), resident(bh.shape),
        resident(whead.shape), resident(bhead.shape),
    ]
    out_specs = pl.BlockSpec((dh_pad, tb), lambda i: (0, i))  # lane-dense
    out_shape = jax.ShapeDtypeStruct((dh_pad, b_out), jnp.float32)

    kernel = functools.partial(enc_wrapped_alt_kernel,
                               num_extra=num_extra, dc_pad=dc_pad, c=c)
    out = pl.pallas_call(
        kernel,
        grid=(n_tiles,),
        in_specs=in_specs,
        out_specs=out_specs,
        out_shape=out_shape,
        compiler_params=pltpu.CompilerParams(
            dimension_semantics=("parallel",),
            vmem_limit_bytes=vmem_limit),
    )(x_flat, w1, b1, wh, bh, whead, bhead)

    # Un-transpose / un-pad in the wrapper (cheap XLA ops on tiny outputs).
    mu = out[:coord_dim, :batch].T.reshape(*lead, coord_dim)
    std = out[dc_pad:dc_pad + var_dim, :batch].T.reshape(*lead, var_dim)
    # NOTE: PyTorch forward also returns self.manifold (a Python object) — not a
    # tensor, so it has no kernel equivalent and is omitted here.
    return mu, std


if __name__ == "__main__":
    # Small shapes consistent with the module: image-like data_size flattened to
    # 256 features, hidden_dim=64, 3 hidden layers, Poincare coord_dim=6.
    batch = 8
    data_size = (1, 16, 16)
    hidden_dim = 64
    num_hidden_layers = 3
    coord_dim = 6
    prior_iso = False

    key = jax.random.PRNGKey(0)
    k_x, k_p = jax.random.split(key)
    x = jax.random.normal(k_x, (batch,) + data_size, jnp.float32)
    params = init_params(k_p, data_size, hidden_dim, num_hidden_layers,
                         coord_dim, prior_iso=prior_iso)
    prep = prepare_params(params)          # one-time cast/pack (not per call)

    mu, std = enc_wrapped_alt_forward(
        x, prep, data_size=data_size, num_hidden_layers=num_hidden_layers)
    jax.block_until_ready((mu, std))

    var_dim = 1 if prior_iso else coord_dim
    assert mu.shape == (batch, coord_dim)
    assert std.shape == (batch, var_dim)
    assert bool(jnp.all(jnp.isfinite(mu)))
    assert bool(jnp.all(std > 0.0))
    # direct_map output must lie strictly inside the unit Poincare ball
    assert bool(jnp.all(jnp.sum(mu * mu, axis=-1) < 1.0))
    print("KERNEL_OK")
</pallas_src>

<mosaic_0001>
module attributes {stable_mosaic.version = 11 : i64} {
  func.func @enc_wrapped_alt_kernel(%arg0: i32, %arg1: memref<8x256xf32, #tpu.memory_space<vmem>>, %arg2: memref<64x256xbf16, #tpu.memory_space<vmem>>, %arg3: memref<1x64xf32, #tpu.memory_space<vmem>>, %arg4: memref<2x64x64xbf16, #tpu.memory_space<vmem>>, %arg5: memref<2x1x64xf32, #tpu.memory_space<vmem>>, %arg6: memref<16x64xbf16, #tpu.memory_space<vmem>>, %arg7: memref<16x1xf32, #tpu.memory_space<vmem>>, %arg8: memref<16x8xf32, #tpu.memory_space<vmem>>) attributes {dimension_semantics = [#tpu.dimension_semantics<parallel>], iteration_bounds = array<i64: 1>, scalar_prefetch = 0 : i64, scratch_operands = 0 : i64, tpu.core_type = #tpu.core_type<tc>, window_params = [{transform_indices = @transform_0, window_bounds = array<i64: 8, 256>}, {pipeline_mode = #tpu.pipeline_mode<synchronous>, transform_indices = @transform_1, window_bounds = array<i64: 64, 256>}, {pipeline_mode = #tpu.pipeline_mode<synchronous>, transform_indices = @transform_2, window_bounds = array<i64: 1, 64>}, {pipeline_mode = #tpu.pipeline_mode<synchronous>, transform_indices = @transform_3, window_bounds = array<i64: 2, 64, 64>}, {pipeline_mode = #tpu.pipeline_mode<synchronous>, transform_indices = @transform_4, window_bounds = array<i64: 2, 1, 64>}, {pipeline_mode = #tpu.pipeline_mode<synchronous>, transform_indices = @transform_5, window_bounds = array<i64: 16, 64>}, {pipeline_mode = #tpu.pipeline_mode<synchronous>, transform_indices = @transform_6, window_bounds = array<i64: 16, 1>}, {transform_indices = @transform_7, window_bounds = array<i64: 16, 8>}]} {
    %c0 = arith.constant 0 : index
    %c0_0 = arith.constant 0 : index
    %0 = vector.load %arg1[%c0, %c0_0] : memref<8x256xf32, #tpu.memory_space<vmem>>, vector<8x256xf32>
    %1 = arith.truncf %0 : vector<8x256xf32> to vector<8x256xbf16>
    %c0_1 = arith.constant 0 : index
    %c0_2 = arith.constant 0 : index
    %2 = vector.load %arg2[%c0_1, %c0_2] : memref<64x256xbf16, #tpu.memory_space<vmem>>, vector<64x256xbf16>
    %cst = arith.constant dense<0.000000e+00> : vector<8x64xf32>
    %3 = tpu.matmul %1, %2, %cst {dimension_numbers = #tpu.dot_dimension_numbers<[1], [1], [0], [0], [0, 0, 1, 0], [], []>} : vector<8x256xbf16>, vector<64x256xbf16>, vector<8x64xf32> -> vector<8x64xf32>
    %c0_3 = arith.constant 0 : index
    %c0_4 = arith.constant 0 : index
    %4 = vector.load %arg3[%c0_3, %c0_4] : memref<1x64xf32, #tpu.memory_space<vmem>>, vector<1x64xf32>
    %5 = vector.broadcast %4 : vector<1x64xf32> to vector<8x64xf32>
    %6 = arith.addf %3, %5 : vector<8x64xf32>
    %cst_5 = arith.constant 0.000000e+00 : f32
    %7 = vector.broadcast %cst_5 : f32 to vector<8x64xf32>
    %8 = arith.maximumf %6, %7 : vector<8x64xf32>
    %9 = arith.truncf %8 : vector<8x64xf32> to vector<8x64xbf16>
    %c0_6 = arith.constant 0 : index
    %c0_7 = arith.constant 0 : index
    %c0_8 = arith.constant 0 : index
    %10 = vector.load %arg4[%c0_6, %c0_7, %c0_8] : memref<2x64x64xbf16, #tpu.memory_space<vmem>>, vector<1x64x64xbf16>
    %11 = vector.shape_cast %10 : vector<1x64x64xbf16> to vector<64x64xbf16>
    %cst_9 = arith.constant dense<0.000000e+00> : vector<8x64xf32>
    %12 = tpu.matmul %9, %11, %cst_9 {dimension_numbers = #tpu.dot_dimension_numbers<[1], [1], [0], [0], [0, 0, 1, 0], [], []>} : vector<8x64xbf16>, vector<64x64xbf16>, vector<8x64xf32> -> vector<8x64xf32>
    %c0_10 = arith.constant 0 : index
    %c0_11 = arith.constant 0 : index
    %c0_12 = arith.constant 0 : index
    %13 = vector.load %arg5[%c0_10, %c0_11, %c0_12] : memref<2x1x64xf32, #tpu.memory_space<vmem>>, vector<1x1x64xf32>
    %14 = vector.shape_cast %13 : vector<1x1x64xf32> to vector<1x64xf32>
    %15 = vector.broadcast %14 : vector<1x64xf32> to vector<8x64xf32>
    %16 = arith.addf %12, %15 : vector<8x64xf32>
    %cst_13 = arith.constant 0.000000e+00 : f32
    %17 = vector.broadcast %cst_13 : f32 to vector<8x64xf32>
    %18 = arith.maximumf %16, %17 : vector<8x64xf32>
    %19 = arith.truncf %18 : vector<8x64xf32> to vector<8x64xbf16>
    %c1 = arith.constant 1 : index
    %c0_14 = arith.constant 0 : index
    %c0_15 = arith.constant 0 : index
    %20 = vector.load %arg4[%c1, %c0_14, %c0_15] : memref<2x64x64xbf16, #tpu.memory_space<vmem>>, vector<1x64x64xbf16>
    %21 = vector.shape_cast %20 : vector<1x64x64xbf16> to vector<64x64xbf16>
    %cst_16 = arith.constant dense<0.000000e+00> : vector<8x64xf32>
    %22 = tpu.matmul %19, %21, %cst_16 {dimension_numbers = #tpu.dot_dimension_numbers<[1], [1], [0], [0], [0, 0, 1, 0], [], []>} : vector<8x64xbf16>, vector<64x64xbf16>, vector<8x64xf32> -> vector<8x64xf32>
    %c1_17 = arith.constant 1 : index
    %c0_18 = arith.constant 0 : index
    %c0_19 = arith.constant 0 : index
    %23 = vector.load %arg5[%c1_17, %c0_18, %c0_19] : memref<2x1x64xf32, #tpu.memory_space<vmem>>, vector<1x1x64xf32>
    %24 = vector.shape_cast %23 : vector<1x1x64xf32> to vector<1x64xf32>
    %25 = vector.broadcast %24 : vector<1x64xf32> to vector<8x64xf32>
    %26 = arith.addf %22, %25 : vector<8x64xf32>
    %cst_20 = arith.constant 0.000000e+00 : f32
    %27 = vector.broadcast %cst_20 : f32 to vector<8x64xf32>
    %28 = arith.maximumf %26, %27 : vector<8x64xf32>
    %c0_21 = arith.constant 0 : index
    %c0_22 = arith.constant 0 : index
    %29 = vector.load %arg6[%c0_21, %c0_22] : memref<16x64xbf16, #tpu.memory_space<vmem>>, vector<16x64xbf16>
    %30 = arith.truncf %28 : vector<8x64xf32> to vector<8x64xbf16>
    %cst_23 = arith.constant dense<0.000000e+00> : vector<16x8xf32>
    %31 = tpu.matmul %29, %30, %cst_23 {dimension_numbers = #tpu.dot_dimension_numbers<[1], [1], [0], [0], [0, 0, 1, 0], [], []>} : vector<16x64xbf16>, vector<8x64xbf16>, vector<16x8xf32> -> vector<16x8xf32>
    %c0_24 = arith.constant 0 : index
    %c0_25 = arith.constant 0 : index
    %32 = vector.load %arg7[%c0_24, %c0_25] : memref<16x1xf32, #tpu.memory_space<vmem>>, vector<16x1xf32>
    %33 = vector.broadcast %32 : vector<16x1xf32> to vector<16x8xf32>
    %34 = arith.addf %31, %33 : vector<16x8xf32>
    %35 = vector.extract_strided_slice %34 {offsets = [0, 0], sizes = [8, 8], strides = [1, 1]} : vector<16x8xf32> to vector<8x8xf32>
    %36 = vector.extract_strided_slice %34 {offsets = [8, 0], sizes = [8, 8], strides = [1, 1]} : vector<16x8xf32> to vector<8x8xf32>
    %37 = arith.mulf %35, %35 : vector<8x8xf32>
    %cst_26 = arith.constant dense<0.000000e+00> : vector<8xf32>
    %38 = vector.multi_reduction <add>, %37, %cst_26 [0] : vector<8x8xf32> to vector<8xf32>
    %39 = vector.shape_cast %38 : vector<8xf32> to vector<1x8xf32>
    %cst_27 = arith.constant 1.000000e-30 : f32
    %40 = vector.broadcast %cst_27 : f32 to vector<1x8xf32>
    %41 = arith.maximumf %39, %40 : vector<1x8xf32>
    %42 = math.sqrt %41 : vector<1x8xf32>
    %43 = math.rsqrt %41 : vector<1x8xf32>
    %cst_28 = arith.constant 1.000000e+00 : f32
    %44 = vector.broadcast %cst_28 : f32 to vector<1x8xf32>
    %45 = arith.mulf %44, %42 : vector<1x8xf32>
    %46 = math.tanh %45 : vector<1x8xf32>
    %47 = vector.broadcast %46 : vector<1x8xf32> to vector<8x8xf32>
    %48 = arith.mulf %47, %35 : vector<8x8xf32>
    %cst_29 = arith.constant 1.000000e+00 : f32
    %49 = vector.broadcast %cst_29 : f32 to vector<1x8xf32>
    %50 = arith.mulf %43, %49 : vector<1x8xf32>
    %51 = vector.broadcast %50 : vector<1x8xf32> to vector<8x8xf32>
    %52 = arith.mulf %48, %51 : vector<8x8xf32>
    %53 = arith.mulf %52, %52 : vector<8x8xf32>
    %cst_30 = arith.constant dense<0.000000e+00> : vector<8xf32>
    %54 = vector.multi_reduction <add>, %53, %cst_30 [0] : vector<8x8xf32> to vector<8xf32>
    %55 = vector.shape_cast %54 : vector<8xf32> to vector<1x8xf32>
    %cst_31 = arith.constant 1.000000e-30 : f32
    %56 = vector.broadcast %cst_31 : f32 to vector<1x8xf32>
    %57 = arith.maximumf %55, %56 : vector<1x8xf32>
    %58 = math.sqrt %57 : vector<1x8xf32>
    %cst_32 = arith.constant 0.995999991 : f32
    %59 = vector.broadcast %cst_32 : f32 to vector<1x8xf32>
    %60 = arith.cmpf ogt, %58, %59 : vector<1x8xf32>
    %61 = math.rsqrt %57 : vector<1x8xf32>
    %cst_33 = arith.constant 0.995999991 : f32
    %62 = vector.broadcast %cst_33 : f32 to vector<1x8xf32>
    %63 = arith.mulf %62, %61 : vector<1x8xf32>
    %cst_34 = arith.constant 1.000000e+00 : f32
    %64 = vector.broadcast %cst_34 : f32 to vector<1x8xf32>
    %65 = arith.select %60, %63, %64 : vector<1x8xi1>, vector<1x8xf32>
    %66 = vector.broadcast %65 : vector<1x8xf32> to vector<8x8xf32>
    %67 = arith.mulf %52, %66 : vector<8x8xf32>
    %cst_35 = arith.constant 2.000000e+01 : f32
    %68 = vector.broadcast %cst_35 : f32 to vector<8x8xf32>
    %69 = arith.minimumf %36, %68 : vector<8x8xf32>
    %70 = math.exp %69 : vector<8x8xf32>
    %cst_36 = arith.constant 2.000000e+01 : f32
    %71 = vector.broadcast %cst_36 : f32 to vector<8x8xf32>
    %72 = arith.cmpf ogt, %36, %71 : vector<8x8xf32>
    %cst_37 = arith.constant -1.000000e+01 : f32
    %73 = vector.broadcast %cst_37 : f32 to vector<8x8xf32>
    %74 = arith.cmpf olt, %36, %73 : vector<8x8xf32>
    %cst_38 = arith.constant 1.000000e+00 : f32
    %75 = vector.broadcast %cst_38 : f32 to vector<8x8xf32>
    %76 = arith.addf %75, %70 : vector<8x8xf32>
    %77 = math.log %76 : vector<8x8xf32>
    %78 = arith.select %74, %70, %77 : vector<8x8xi1>, vector<8x8xf32>
    %79 = arith.select %72, %36, %78 : vector<8x8xi1>, vector<8x8xf32>
    %cst_39 = arith.constant 9.99999974E-6 : f32
    %80 = vector.broadcast %cst_39 : f32 to vector<8x8xf32>
    %81 = arith.addf %79, %80 : vector<8x8xf32>
    %82 = tpu.concatenate %67, %81 in 0 : vector<8x8xf32>, vector<8x8xf32> -> vector<16x8xf32>
    %c0_40 = arith.constant 0 : index
    %c0_41 = arith.constant 0 : index
    %83 = vector.load %arg8[%c0_40, %c0_41] : memref<16x8xf32, #tpu.memory_space<vmem>>, vector<16x8xf32>
    tpu.vector_store %arg8[%c0_40, %c0_41], %82 {strides = array<i32>} : memref<16x8xf32, #tpu.memory_space<vmem>>, vector<16x8xf32>,
    return
  }
  func.func @transform_0(%arg0: i32) -> (i32, i32) {
    %c0_i32 = arith.constant 0 : i32
    %c0_i32_0 = arith.constant 0 : i32
    return %arg0, %c0_i32 : i32, i32
  }
  func.func @transform_1(%arg0: i32) -> (i32, i32) {
    %c0_i32 = arith.constant 0 : i32
    %c0_i32_0 = arith.constant 0 : i32
    %c0_i32_1 = arith.constant 0 : i32
    return %c0_i32, %c0_i32_0 : i32, i32
  }
  func.func @transform_2(%arg0: i32) -> (i32, i32) {
    %c0_i32 = arith.constant 0 : i32
    %c0_i32_0 = arith.constant 0 : i32
    %c0_i32_1 = arith.constant 0 : i32
    return %c0_i32, %c0_i32_0 : i32, i32
  }
  func.func @transform_3(%arg0: i32) -> (i32, i32, i32) {
    %c0_i32 = arith.constant 0 : i32
    %c0_i32_0 = arith.constant 0 : i32
    %c0_i32_1 = arith.constant 0 : i32
    %c0_i32_2 = arith.constant 0 : i32
    return %c0_i32, %c0_i32_0, %c0_i32_1 : i32, i32, i32
  }
  func.func @transform_4(%arg0: i32) -> (i32, i32, i32) {
    %c0_i32 = arith.constant 0 : i32
    %c0_i32_0 = arith.constant 0 : i32
    %c0_i32_1 = arith.constant 0 : i32
    %c0_i32_2 = arith.constant 0 : i32
    return %c0_i32, %c0_i32_0, %c0_i32_1 : i32, i32, i32
  }
  func.func @transform_5(%arg0: i32) -> (i32, i32) {
    %c0_i32 = arith.constant 0 : i32
    %c0_i32_0 = arith.constant 0 : i32
    %c0_i32_1 = arith.constant 0 : i32
    return %c0_i32, %c0_i32_0 : i32, i32
  }
  func.func @transform_6(%arg0: i32) -> (i32, i32) {
    %c0_i32 = arith.constant 0 : i32
    %c0_i32_0 = arith.constant 0 : i32
    %c0_i32_1 = arith.constant 0 : i32
    return %c0_i32, %c0_i32_0 : i32, i32
  }
  func.func @transform_7(%arg0: i32) -> (i32, i32) {
    %c0_i32 = arith.constant 0 : i32
    %c0_i32_0 = arith.constant 0 : i32
    return %c0_i32, %arg0 : i32, i32
  }
}

</mosaic_0001>

<llo_original>
// kernel: tpu_custom_call.1
$region0: #{tpu_custom_call.1}
  #allocation0 [shape = 'u32[]', space=smem, size = 0x4, offset = 0x4, fixed_abs, tag = 'smem constant byte address 0x4 - core index']
  #allocation1 [shape = 'u32[72,128]{1,0:T(1,128)}', space=vmem, size = 0x9000, scoped, tag = 'internal scratch']
  %s0 = inlined_call_operand.vmem [shape: f32[8,256], index: 0, kind: input, shape index: {}]
  %s1 = inlined_call_operand.hbm [shape: bf16[64,256], index: 1, kind: input, shape index: {}]
  %s2 = inlined_call_operand.vmem [shape: f32[1,64], index: 2, kind: input, shape index: {}]
  %s3 = inlined_call_operand.hbm [shape: bf16[2,64,64], index: 3, kind: input, shape index: {}]
  %s4 = inlined_call_operand.vmem [shape: f32[2,1,64], index: 4, kind: input, shape index: {}]
  %s5 = inlined_call_operand.hbm [shape: bf16[16,64], index: 5, kind: input, shape index: {}]
  %s6 = inlined_call_operand.vmem [shape: f32[16,1], index: 6, kind: input, shape index: {}]
  %s7 = inlined_call_operand.vmem [shape: f32[16,8], index: 7, kind: output, shape index: {}]
  %s8 = sld [smem:[#allocation0]]
  $region50: #{tpu_custom_call.1} parent=0
    _
  %s10 = ssub.s32 1, %s8
  %s11 = scalar_select 0, %s10, %s8
  $region1: #{tpu_custom_call.1} parent=0
    #allocation2 [shape = 'u8[32768]{0}', space=vmem, size = 0x8000, scoped, tag = 'input window, operand 1, single buffered']
    #allocation3 [shape = 's32[1]{0}', space=sflag, size = 0x4, scoped, tag = 'scoped memory for tpu_custom_call.1']
    #allocation4 [shape = 'u8[32768]{0}', space=vmem, size = 0x8000, scoped, tag = 'input window, operand 3, single buffered']
    #allocation5 [shape = 's32[1]{0}', space=sflag, size = 0x4, scoped, tag = 'scoped memory for tpu_custom_call.1']
    #allocation6 [shape = 'u8[4096]{0}', space=vmem, size = 0x1000, scoped, tag = 'input window, operand 5, single buffered']
    %12 = vsyncpa [#allocation3], 0
    %13 = vsyncpa [#allocation5], 0
    // Predicated region
    $region2: #{tpu_custom_call.1} parent=1 // pred_check
      _
    $region3: #{tpu_custom_call.1} parent=1 // pred_check_branch
      %15 = sbr.rel (0) target = $region5
    $region4: #{tpu_custom_call.1} parent=1 // pred_region
      _
    $region5: #{tpu_custom_call.1} parent=1 // pred_fallthru
      _
    // Predicated region
    $region6: #{tpu_custom_call.1} parent=1 // pred_check
      _
    $region7: #{tpu_custom_call.1} parent=1 // pred_check_branch
      %17 = sbr.rel (0) target = $region9
    $region8: #{tpu_custom_call.1} parent=1 // pred_region
      %19 = vsyncadd [#allocation3], 0
      %s20 = sshll.u32 %s1, 4
      %s21 = int_to_ptr.hbm [resolvable:$true] %s20
      %s22 = sshll.u32 [#allocation2], 4
      %s23 = int_to_ptr.vmem [resolvable:$true] %s22
      %28 = dma.hbm_to_vmem [thread:$0]  %s21, 1024, %s23, [#allocation3], 128, 128, 8
    $region9: #{tpu_custom_call.1} parent=1 // pred_fallthru
      _
    // Predicated region
    $region10: #{tpu_custom_call.1} parent=1 // pred_check
      _
    $region11: #{tpu_custom_call.1} parent=1 // pred_check_branch
      %30 = sbr.rel (0) target = $region13
    $region12: #{tpu_custom_call.1} parent=1 // pred_region
      _
    $region13: #{tpu_custom_call.1} parent=1 // pred_fallthru
      _
    // Predicated region
    $region14: #{tpu_custom_call.1} parent=1 // pred_check
      _
    $region15: #{tpu_custom_call.1} parent=1 // pred_check_branch
      %32 = sbr.rel (0) target = $region17
    $region16: #{tpu_custom_call.1} parent=1 // pred_region
      %34 = vsyncadd [#allocation5], 0
      %s35 = sshll.u32 %s3, 4
      %s36 = int_to_ptr.hbm [resolvable:$true] %s35
      %s37 = sshll.u32 [#allocation4], 4
      %s38 = int_to_ptr.vmem [resolvable:$true] %s37
      %43 = dma.hbm_to_vmem [thread:$0]  %s36, 1024, %s38, [#allocation5], 64, 64, 4
    $region17: #{tpu_custom_call.1} parent=1 // pred_fallthru
      _
    // Predicated region
    $region18: #{tpu_custom_call.1} parent=1 // pred_check
      _
    $region19: #{tpu_custom_call.1} parent=1 // pred_check_branch
      %45 = sbr.rel (0) target = $region21
    $region20: #{tpu_custom_call.1} parent=1 // pred_region
      _
    $region21: #{tpu_custom_call.1} parent=1 // pred_fallthru
      _
    // Predicated region
    $region22: #{tpu_custom_call.1} parent=1 // pred_check
      _
    $region23: #{tpu_custom_call.1} parent=1 // pred_check_branch
      %47 = sbr.rel (0) target = $region25
    $region24: #{tpu_custom_call.1} parent=1 // pred_region
      %49 = vsyncadd [#allocation5], 0
      %s50 = sshll.u32 %s5, 4
      %s51 = int_to_ptr.hbm [resolvable:$true] %s50
      %s52 = sshll.u32 [#allocation6], 4
      %s53 = int_to_ptr.vmem [resolvable:$true] %s52
      %58 = dma.hbm_to_vmem [thread:$0]  %s51, 128, %s53, [#allocation5], 64, 64, 4
    $region25: #{tpu_custom_call.1} parent=1 // pred_fallthru
      _
    // Predicated region
    $region26: #{tpu_custom_call.1} parent=1 // pred_check
      _
    $region27: #{tpu_custom_call.1} parent=1 // pred_check_branch
      %60 = sbr.rel (0) target = $region29
    $region28: #{tpu_custom_call.1} parent=1 // pred_region
      _
    $region29: #{tpu_custom_call.1} parent=1 // pred_fallthru
      _
    // Predicated region
    $region30: #{tpu_custom_call.1} parent=1 // pred_check
      _
    $region31: #{tpu_custom_call.1} parent=1 // pred_check_branch
      %62 = sbr.rel (0) target = $region33
    $region32: #{tpu_custom_call.1} parent=1 // pred_region
      %64 = dma.done [#allocation3], 1024
    $region33: #{tpu_custom_call.1} parent=1 // pred_fallthru
      _
    // Predicated region
    $region34: #{tpu_custom_call.1} parent=1 // pred_check
      _
    $region35: #{tpu_custom_call.1} parent=1 // pred_check_branch
      %66 = sbr.rel (0) target = $region37
    $region36: #{tpu_custom_call.1} parent=1 // pred_region
      %68 = dma.done [#allocation5], 1024
    $region37: #{tpu_custom_call.1} parent=1 // pred_fallthru
      _
    // Predicated region
    $region38: #{tpu_custom_call.1} parent=1 // pred_check
      _
    $region39: #{tpu_custom_call.1} parent=1 // pred_check_branch
      %70 = sbr.rel (0) target = $region41
    $region40: #{tpu_custom_call.1} parent=1 // pred_region
      %72 = dma.done [#allocation5], 128
    $region41: #{tpu_custom_call.1} parent=1 // pred_fallthru
      _
    %v74 = vld [vmem:[%s0] sm:$0xff]
    %v75 = vld [vmem:[%s0 + $0x8] sm:$0xff]
    %v76 = vpack.c.bf16 %v74, %v74
    %v77 = vpack.c.bf16 %v75, %v75
    %v78 = vld [vmem:[#allocation2] sm:$0xff]
    %v79 = vld [vmem:[#allocation2 + $0x8] sm:$0xff]
    %v80 = vld [vmem:[#allocation2 + $0x10] sm:$0xff]
    %v81 = vld [vmem:[#allocation2 + $0x18] sm:$0xff]
    %v82 = vld [vmem:[#allocation2 + $0x20] sm:$0xff]
    %v83 = vld [vmem:[#allocation2 + $0x28] sm:$0xff]
    %v84 = vld [vmem:[#allocation2 + $0x30] sm:$0xff]
    %v85 = vld [vmem:[#allocation2 + $0x38] sm:$0xff]
    %v86 = vld [vmem:[%s2] sm:$0x1]
    %v88 = vperm.slane %v86, 0
    %v98 = vunpack.c.l.b16 %v78
    %v99 = vunpack.c.h.b16 %v78
    %v100 = vunpack.c.l.b16 %v79
    %v101 = vunpack.c.h.b16 %v79
    %v102 = vunpack.c.l.b16 %v80
    %v103 = vunpack.c.h.b16 %v80
    %v104 = vunpack.c.l.b16 %v81
    %v105 = vunpack.c.h.b16 %v81
    %v106 = vunpack.c.l.b16 %v82
    %v107 = vunpack.c.h.b16 %v82
    %v108 = vunpack.c.l.b16 %v83
    %v109 = vunpack.c.h.b16 %v83
    %v110 = vunpack.c.l.b16 %v84
    %v111 = vunpack.c.h.b16 %v84
    %v112 = vunpack.c.l.b16 %v85
    %v113 = vunpack.c.h.b16 %v85
    %v114 = vpack.c.b16 %v100, %v98
    %v115 = vpack.c.b16 %v101, %v99
    %v116 = vpack.c.b16 %v104, %v102
    %v117 = vpack.c.b16 %v105, %v103
    %v118 = vpack.c.b16 %v108, %v106
    %v119 = vpack.c.b16 %v109, %v107
    %v120 = vpack.c.b16 %v112, %v110
    %v121 = vpack.c.b16 %v113, %v111
    %130 = vmatpush.bf16.xpose.msra.mxu0 0
    %131 = vmatpush.bf16.xpose.msra.mxu0 0
    %132 = vmatpush.bf16.xpose.msra.mxu0 0
    %133 = vmatpush.bf16.xpose.msra.mxu0 0
    %134 = vmatpush.bf16.xpose.msra.mxu0 %v120
    %135 = vmatpush.bf16.xpose.msra.mxu0 %v118
    %136 = vmatpush.bf16.xpose.msra.mxu0 %v116
    %137 = vmatpush.bf16.xpose.msra.mxu0 %v114
    %138 = vmatmul.bf16.gmra.mxu0 %v76
    %v139 = vpop.f32.mrf.mxu0
    %v140 = vadd.f32 %v88, %v139
    %v141 = vpop.f32.mrf.mxu0
    %142 = vdwg.mxu0
    %143 = vmatpush.bf16.xpose.msra.mxu0 0
    %144 = vmatpush.bf16.xpose.msra.mxu0 0
    %145 = vmatpush.bf16.xpose.msra.mxu0 0
    %146 = vmatpush.bf16.xpose.msra.mxu0 0
    %147 = vmatpush.bf16.xpose.msra.mxu0 %v121
    %148 = vmatpush.bf16.xpose.msra.mxu0 %v119
    %149 = vmatpush.bf16.xpose.msra.mxu0 %v117
    %150 = vmatpush.bf16.xpose.msra.mxu0 %v115
    %151 = vmatmul.bf16.gmra.mxu0 %v77
    %v152 = vpop.f32.mrf.mxu0
    %v153 = vadd.f32 %v140, %v152
    %v154 = vpop.f32.mrf.mxu0
    %155 = vdwg.mxu0
    %v156 = vmax.f32 %v153, 0.0
    %v157 = vpack.c.bf16 %v156, %v156
    %v158 = vld [vmem:[#allocation4] sm:$0xf]
    %v159 = vld [vmem:[#allocation4 + $0x4] sm:$0xf]
    %v160 = vld [vmem:[#allocation4 + $0x8] sm:$0xf]
    %v161 = vld [vmem:[#allocation4 + $0xc] sm:$0xf]
    %v162 = vld [vmem:[#allocation4 + $0x10] sm:$0xf]
    %v163 = vld [vmem:[#allocation4 + $0x14] sm:$0xf]
    %v164 = vld [vmem:[#allocation4 + $0x18] sm:$0xf]
    %v165 = vld [vmem:[#allocation4 + $0x1c] sm:$0xf]
    %v166 = vld [vmem:[%s4] sm:$0x1]
    %v168 = vperm.slane %v166, 0
    %v178 = vunpack.c.l.b16 %v158
    %v179 = vunpack.c.l.b16 %v159
    %v180 = vunpack.c.l.b16 %v160
    %v181 = vunpack.c.l.b16 %v161
    %v182 = vunpack.c.l.b16 %v162
    %v183 = vunpack.c.l.b16 %v163
    %v184 = vunpack.c.l.b16 %v164
    %v185 = vunpack.c.l.b16 %v165
    %v186 = vpack.c.b16 %v179, %v178
    %v187 = vpack.c.b16 %v181, %v180
    %v188 = vpack.c.b16 %v183, %v182
    %v189 = vpack.c.b16 %v185, %v184
    %vm190 = vcmask 523264
    %v192 = vsel %vm190, %v157, 0
    %v195 = vsel %vm190, %v186, 0
    %v198 = vsel %vm190, %v187, 0
    %v201 = vsel %vm190, %v188, 0
    %v204 = vsel %vm190, %v189, 0
    %206 = vmatpush.bf16.xpose.msra.mxu0 0
    %207 = vmatpush.bf16.xpose.msra.mxu0 0
    %208 = vmatpush.bf16.xpose.msra.mxu0 0
    %209 = vmatpush.bf16.xpose.msra.mxu0 0
    %210 = vmatpush.bf16.xpose.msra.mxu0 %v204
    %211 = vmatpush.bf16.xpose.msra.mxu0 %v201
    %212 = vmatpush.bf16.xpose.msra.mxu0 %v198
    %213 = vmatpush.bf16.xpose.msra.mxu0 %v195
    %214 = vmatmul.bf16.gmra.mxu0 %v192
    %v215 = vpop.f32.mrf.mxu0
    %v216 = vadd.f32 %v168, %v215
    %v217 = vpop.f32.mrf.mxu0
    %218 = vdwg.mxu0
    %v219 = vmax.f32 %v216, 0.0
    %v220 = vpack.c.bf16 %v219, %v219
    %s221 = scalar_lea.vmem [#allocation4], 32
    %v222 = vld [vmem:[%s221] sm:$0xf]
    %v223 = vld [vmem:[%s221 + $0x4] sm:$0xf]
    %v224 = vld [vmem:[%s221 + $0x8] sm:$0xf]
    %v225 = vld [vmem:[%s221 + $0xc] sm:$0xf]
    %v226 = vld [vmem:[%s221 + $0x10] sm:$0xf]
    %v227 = vld [vmem:[%s221 + $0x14] sm:$0xf]
    %v228 = vld [vmem:[%s221 + $0x18] sm:$0xf]
    %v229 = vld [vmem:[%s221 + $0x1c] sm:$0xf]
    %s230 = scalar_lea.vmem %s4, 1
    %v231 = vld [vmem:[%s230] sm:$0x1]
    %v233 = vperm.slane %v231, 0
    %v243 = vunpack.c.l.b16 %v222
    %v244 = vunpack.c.l.b16 %v223
    %v245 = vunpack.c.l.b16 %v224
    %v246 = vunpack.c.l.b16 %v225
    %v247 = vunpack.c.l.b16 %v226
    %v248 = vunpack.c.l.b16 %v227
    %v249 = vunpack.c.l.b16 %v228
    %v250 = vunpack.c.l.b16 %v229
    %v251 = vpack.c.b16 %v244, %v243
    %v252 = vpack.c.b16 %v246, %v245
    %v253 = vpack.c.b16 %v248, %v247
    %v254 = vpack.c.b16 %v250, %v249
    %v256 = vsel %vm190, %v220, 0
    %v259 = vsel %vm190, %v251, 0
    %v262 = vsel %vm190, %v252, 0
    %v265 = vsel %vm190, %v253, 0
    %v268 = vsel %vm190, %v254, 0
    %270 = vmatpush.bf16.xpose.msra.mxu0 0
    %271 = vmatpush.bf16.xpose.msra.mxu0 0
    %272 = vmatpush.bf16.xpose.msra.mxu0 0
    %273 = vmatpush.bf16.xpose.msra.mxu0 0
    %274 = vmatpush.bf16.xpose.msra.mxu0 %v268
    %275 = vmatpush.bf16.xpose.msra.mxu0 %v265
    %276 = vmatpush.bf16.xpose.msra.mxu0 %v262
    %277 = vmatpush.bf16.xpose.msra.mxu0 %v259
    %278 = vmatmul.bf16.gmra.mxu0 %v256
    %v279 = vpop.f32.mrf.mxu0
    %v280 = vadd.f32 %v233, %v279
    %v281 = vpop.f32.mrf.mxu0
    %282 = vdwg.mxu0
    %v283 = vmax.f32 %v280, 0.0
    %v284 = vld [vmem:[#allocation6] sm:$0xf]
    %v285 = vld [vmem:[#allocation6 + $0x4] sm:$0xf]
    %v286 = vpack.c.bf16 %v283, %v283
    %v287 = vld [vmem:[%s6] sm:$0xff]
    %v288 = vld [vmem:[%s6 + $0x8] sm:$0xff]
    %290 = vset.pattern.permute.xlu0 0
    %291 = vperm.xlu0 %290, %v287
    %v292 = vpop.permute.xlu0 %291
    %295 = vset.pattern.permute.xlu0 0
    %296 = vperm.xlu0 %295, %v288
    %v297 = vpop.permute.xlu0 %296
    %v301 = vunpack.c.l.b16 %v284
    %v302 = vunpack.c.l.b16 %v285
    %v303 = vpack.c.b16 %v302, %v301
    %v305 = vsel %vm190, %v303, 0
    %v308 = vsel %vm190, %v286, 0
    %310 = vmatpush.bf16.xpose.msra.mxu0 0
    %311 = vmatpush.bf16.xpose.msra.mxu0 0
    %312 = vmatpush.bf16.xpose.msra.mxu0 0
    %313 = vmatpush.bf16.xpose.msra.mxu0 0
    %314 = vmatpush.bf16.xpose.msra.mxu0 0
    %315 = vmatpush.bf16.xpose.msra.mxu0 0
    %316 = vmatpush.bf16.xpose.msra.mxu0 0
    %317 = vmatpush.bf16.xpose.msra.mxu0 %v308
    %318 = vmatmul.bf16.gmra.mxu0 %v305
    %v319 = vpop.f32.mrf.mxu0
    %v320 = vadd.f32 %v292, %v319
    %v321 = vpop.f32.mrf.mxu0
    %v322 = vadd.f32 %v297, %v321
    %323 = vdwg.mxu0
    %v324 = vmul.f32 %v320, %v320
    %vm325 = vcmask 64512
    %v326 = vsel %vm325, %v324, 0.0
    %v327 = vrot.slane %v326, 4
    %v328 = vadd.f32 %v326, %v327
    %v329 = vrot.slane %v328, 2
    %v330 = vadd.f32 %v328, %v329
    %v331 = vrot.slane %v330, 1
    %v332 = vadd.f32 %v330, %v331
    %v333 = vmax.f32 %v332, 1e-30
    %v334 = vrsqrt.pop %v333
    %v335 = vmul.f32 %v334, %v333
    %v336 = vmul.f32 %v335, %v334
    %v337 = vmul.f32 0.5, %v336
    %v338 = vsub.f32 1.5, %v337
    %v339 = vmul.f32 %v334, %v338
    %v340 = vmul.f32 %v333, %v339
    %vm341 = vcmp.eq.f32.partialorder %v333, inf
    %v342 = vsel %vm341, %v333, %v340
    %vm343 = vcmp.eq.f32.partialorder %v333, 0.0
    %v344 = vand.u32 %v333, 2147483648
    %v345 = vsel %vm343, %v344, %v342
    %v346 = vrsqrt.pop %v333
    %v347 = vmul.f32 %v346, %v333
    %v348 = vmul.f32 %v347, %v346
    %v349 = vmul.f32 0.5, %v348
    %v350 = vsub.f32 1.5, %v349
    %v351 = vmul.f32 %v346, %v350
    %vm352 = vweird.f32 %v333
    %vm353 = vweird.f32 %v346
    %vm354 = vmor %vm352, %vm353
    %v355 = vsel %vm354, %v346, %v351
    %v356 = vtanh.pop %v345
    %v357 = vmul.f32 %v356, %v320
    %v358 = vmul.f32 %v357, %v355
    %v359 = vmul.f32 %v358, %v358
    %v360 = vsel %vm325, %v359, 0.0
    %v361 = vrot.slane %v360, 4
    %v362 = vadd.f32 %v360, %v361
    %v363 = vrot.slane %v362, 2
    %v364 = vadd.f32 %v362, %v363
    %v365 = vrot.slane %v364, 1
    %v366 = vadd.f32 %v364, %v365
    %v367 = vmax.f32 %v366, 1e-30
    %v368 = vrsqrt.pop %v367
    %v369 = vmul.f32 %v368, %v367
    %v370 = vmul.f32 %v369, %v368
    %v371 = vmul.f32 0.5, %v370
    %v372 = vsub.f32 1.5, %v371
    %v373 = vmul.f32 %v368, %v372
    %v374 = vmul.f32 %v367, %v373
    %vm375 = vcmp.eq.f32.partialorder %v367, inf
    %v376 = vsel %vm375, %v367, %v374
    %vm377 = vcmp.eq.f32.partialorder %v367, 0.0
    %v378 = vand.u32 %v367, 2147483648
    %v379 = vsel %vm377, %v378, %v376
    %vm380 = vcmp.gt.f32.partialorder %v379, 0.996
    %v381 = vrsqrt.pop %v367
    %v382 = vmul.f32 %v381, %v367
    %v383 = vmul.f32 %v382, %v381
    %v384 = vmul.f32 0.5, %v383
    %v385 = vsub.f32 1.5, %v384
    %v386 = vmul.f32 %v381, %v385
    %vm387 = vweird.f32 %v367
    %vm388 = vweird.f32 %v381
    %vm389 = vmor %vm387, %vm388
    %v390 = vsel %vm389, %v381, %v386
    %v391 = vmul.f32 %v390, 0.996
    %v392 = vsel %vm380, %v391, 1.0
    %v393 = vmul.f32 %v358, %v392
    %v394 = vmin.f32 %v322, 20.0
    %v395 = vmul.f32 %v394, 1.442695
    %v396 = vpow.pop %v395
    %vm397 = vcmp.gt.f32.partialorder %v322, 20.0
    %vm398 = vcmp.lt.f32.partialorder %v322, -10.0
    %v399 = vadd.f32 %v396, 1.0
    %v400 = vlog2.pop %v399
    %v401 = vmul.f32 %v400, 0.6931472
    %v402 = vsel %vm398, %v396, %v401
    %v403 = vsel %vm397, %v322, %v402
    %v404 = vadd.f32 %v403, 1e-05
    %405 = vst.msk [vmem:[%s7] sm:$0xff] %vm325, %v393
    %406 = vst.msk [vmem:[%s7 + $0x8] sm:$0xff] %vm325, %v404
    // Predicated region
    $region42: #{tpu_custom_call.1} parent=1 // pred_check
      _
    $region43: #{tpu_custom_call.1} parent=1 // pred_check_branch
      %408 = sbr.rel (0) target = $region45
    $region44: #{tpu_custom_call.1} parent=1 // pred_region
      _
    $region45: #{tpu_custom_call.1} parent=1 // pred_fallthru
      _
    // Predicated region
    $region46: #{tpu_custom_call.1} parent=1 // pred_check
      _
    $region47: #{tpu_custom_call.1} parent=1 // pred_check_branch
      %410 = sbr.rel (0) target = $region49
    $region48: #{tpu_custom_call.1} parent=1 // pred_region
      _
    $region49: #{tpu_custom_call.1} parent=1 // pred_fallthru
      _
    %411 = vsyncpa [#allocation3], 1
    %412 = vsyncpa [#allocation5], 1

</llo_original>
